<compile_context>
chip_gen: v6e
topology: v6e:2x2x1
jax: 0.10.0
libtpu: 0.0.40
codegen_flags: <defaults>
</compile_context>

<pallas_src>
import numpy as np
import jax
import jax.numpy as jnp
from jax import lax
from jax.experimental import pallas as pl
from jax.experimental.pallas import tpu as pltpu


_LANE = 128
_NEG_BIG = -1e30


def _round_up(x, m):
    return ((x + m - 1) // m) * m


def _pick_tile(hw):
    """Spatial tile: lane-dense, <=1024 (fits default scoped VMEM on all gens
    at large C), >=2 grid steps for megacore once the feature map is big."""
    hw_128 = _round_up(hw, _LANE)
    if hw_128 <= 512:
        return hw_128          # tiny maps: one step, no padding beyond 128
    if hw_128 <= 4096:
        return 512             # >=2 grid steps, modest VMEM
    return 1024                # large maps: amortize per-step overhead


def _bucket_protos(p):
    """Pad prototype rows to a bucketed multiple of 16 (bf16 sublane pack).
    Bucketing (powers of two) keeps the number of distinct compiles tiny even
    though P is data-dependent."""
    return max(16, 1 << (max(int(p), 1) - 1).bit_length())


# ----------------------------- Pallas kernel ------------------------------ #

def _make_pred_kernel(emit_dists):
    def kernel(nvalid_ref, q_ref, p_ref, pred_ref, assign_ref, *rest):
        num_valid = nvalid_ref[0]                         # SMEM scalar (runtime P)
        q = q_ref[...]                                    # [C, T] bf16
        qf = q.astype(jnp.float32)

        # safe_norm(qry): fold 20 / max(||q||, 1e-4) into a post-matmul scale.
        # ||q||^2 per column on the (idle) MXU: ones[1,C] @ (qf*qf).
        ones_c = jnp.ones((1, qf.shape[0]), jnp.float32)
        ss = lax.dot_general(ones_c, qf * qf,
                             dimension_numbers=(((1,), (0,)), ((), ())),
                             preferred_element_type=jnp.float32)      # [1, T]
        scale = 20.0 * lax.rsqrt(jnp.maximum(ss, 1e-8))                # EUP rsqrt

        # F.conv2d(qhat, protos[...,None,None]) * 20 == (protos @ q) * scale
        # bf16 operands, f32 accumulation on the MXU (single pass).
        raw = lax.dot_general(p_ref[...], q,
                              dimension_numbers=(((1,), (0,)), ((), ())),
                              preferred_element_type=jnp.float32)      # [Pp, T]
        dists = raw * scale

        # Mask padded prototype rows before the reductions over P.
        row = lax.broadcasted_iota(jnp.int32, dists.shape, 0)
        masked = jnp.where(row < num_valid, dists, _NEG_BIG)

        m = jnp.max(masked, axis=0, keepdims=True)                     # [1, T]
        e = jnp.exp(masked - m)                                        # 0 at pads

        # softmax-weighted sum without materializing the softmax:
        #   pred = sum(e * dists) / sum(e); both axis-0 sums on the MXU.
        ones_p = jnp.ones((1, e.shape[0]), jnp.float32)
        den = lax.dot_general(ones_p, e,
                              dimension_numbers=(((1,), (0,)), ((), ())),
                              preferred_element_type=jnp.float32)      # [1, T]
        num = lax.dot_general(ones_p, e * dists,
                              dimension_numbers=(((1,), (0,)), ((), ())),
                              preferred_element_type=jnp.float32)      # [1, T]
        pred_ref[...] = num / den

        # argmax over prototypes (first maximal index), returned as float.
        # Equality compare against the SAME tensor the max was taken from.
        idx = jnp.min(jnp.where(masked == m, row, dists.shape[0]),
                      axis=0, keepdims=True)
        assign_ref[...] = idx.astype(jnp.float32)

        if emit_dists:
            rest[0][...] = dists.astype(jnp.bfloat16)   # vis-only, halve HBM write
    return kernel


def _run_pred_kernel(q_cl, protos, want_dists=False):
    """q_cl: [C, HW] (any float dtype), protos: [P, C] (safe-normed).

    Returns (pred [1, HW] f32, assign [1, HW] f32, dists [P, HW] f32 or None).
    """
    C, HW = q_cl.shape
    P = int(protos.shape[0])
    if P == 0:
        # torch would crash downstream; fail loudly on host instead.
        raise ValueError("MultiProtoAsConv: no prototypes above threshold")

    tile = _pick_tile(HW)
    hw_pad = _round_up(HW, tile)
    p_pad = _bucket_protos(P)

    # bf16 query (MXU operand dtype) — also halves the dominant HBM read.
    q_b = q_cl.astype(jnp.bfloat16)
    # TODO(synk): for non-multiple HW a cdiv grid + in-kernel tail mask would
    # avoid this extra pad copy; padded zero columns are harmless and sliced off.
    q_p = q_b if hw_pad == HW else jnp.pad(q_b, ((0, 0), (0, hw_pad - HW)))
    p_p = jnp.pad(protos.astype(jnp.bfloat16), ((0, p_pad - P), (0, 0)))
    nvalid = jnp.asarray([P], dtype=jnp.int32)            # runtime, not compiled-in

    out_shape = [jax.ShapeDtypeStruct((1, hw_pad), jnp.float32),
                 jax.ShapeDtypeStruct((1, hw_pad), jnp.float32)]
    out_specs = [pl.BlockSpec((1, tile), lambda i, nv: (0, i)),
                 pl.BlockSpec((1, tile), lambda i, nv: (0, i))]
    if want_dists:
        out_shape.append(jax.ShapeDtypeStruct((p_pad, hw_pad), jnp.bfloat16))
        out_specs.append(pl.BlockSpec((p_pad, tile), lambda i, nv: (0, i)))

    outs = pl.pallas_call(
        _make_pred_kernel(want_dists),
        out_shape=tuple(out_shape),
        grid_spec=pltpu.PrefetchScalarGridSpec(
            num_scalar_prefetch=1,
            grid=(hw_pad // tile,),
            in_specs=[pl.BlockSpec((C, tile), lambda i, nv: (0, i)),
                      pl.BlockSpec((p_pad, C), lambda i, nv: (0, 0))],  # resident
            out_specs=tuple(out_specs)),
        compiler_params=pltpu.CompilerParams(
            dimension_semantics=("parallel",)),
    )(nvalid, q_p, p_p)

    pred = outs[0][:, :HW]
    assign = outs[1][:, :HW]
    dists = outs[2][:P, :HW].astype(jnp.float32) if want_dists else None
    return pred, assign, dists


# ------------------------------- JAX glue --------------------------------- #

def safe_norm(x, p=2, dim=1, eps=1e-4):
    # matches torch: clamp L2-norm at eps, divide
    n = jnp.sqrt(jnp.sum(x * x, axis=dim))
    n = jnp.maximum(n, eps)
    return x / jnp.expand_dims(n, dim)


class MultiProtoAsConv:
    def __init__(self, proto_grid, feature_hw, embed_dim=768,
                 use_attention=False, upsample_mode='bilinear'):
        self.feature_hw = feature_hw
        self.proto_grid = proto_grid
        self.upsample_mode = upsample_mode
        self.kernel_size = [f // g for f, g in zip(feature_hw, proto_grid)]
        # use_attention=False => module has no learnable params (only AvgPool2d).
        # TODO(synk): use_attention=True branch (MHA + mask projections) is never
        # used by forward() and is not implemented here.
        assert not use_attention

    @staticmethod
    def _avg_pool2d(x, k):
        n, c, h, w = x.shape
        return x.reshape(n, c, h // k, k, w // k, k).mean(axis=(3, 5))

    def get_prototypes(self, sup_x, sup_y, mode, val_wsize, thresh, isval=False):
        if mode not in ('gridconv', 'gridconv+'):
            # TODO(synk): 'mask' prototype mode not implemented in this script.
            raise NotImplementedError(mode)

        shot, nch = sup_x.shape[0], sup_x.shape[1]
        k = val_wsize if isval else self.kernel_size[0]
        n_sup_x = self._avg_pool2d(sup_x, k)                 # [shot, nc, Hp, Wp]
        sup_y_g = self._avg_pool2d(sup_y, k)                 # [shot, 1,  Hp, Wp]

        # flatten exactly like torch: view(shot,nc,-1).permute(0,2,1) -> [shot*Hp*Wp, nc]
        feats = jnp.transpose(n_sup_x.reshape(shot, nch, -1), (0, 2, 1)).reshape(-1, nch)
        mask_flat = np.asarray(sup_y_g.reshape(shot, -1)).reshape(-1)

        # proto_grid bookkeeping / resized grid (visualization) — concrete numpy.
        # TODO(synk): data-dependent selection / python loops kept host-side.
        proto_grid = np.array(sup_y_g)                       # [shot, 1, Hp, Wp]
        proto_grid[proto_grid < thresh] = 0.0
        non_zero = np.argwhere(proto_grid)
        if mode == 'gridconv+':
            for i, idx in enumerate(non_zero):
                proto_grid[0, idx[1], idx[2], idx[3]] = i + 1
        resized_proto_grid = np.zeros(
            (1, 1, proto_grid.shape[2] * val_wsize, proto_grid.shape[3] * val_wsize),
            dtype=np.float32)
        for index in non_zero:
            r, c = int(index[2]), int(index[3])
            # (width "+2" reproduces the original implementation verbatim)
            resized_proto_grid[0, 0, r * val_wsize:r * val_wsize + val_wsize,
                               c * val_wsize:c * val_wsize + 2] = proto_grid[0, 0, r, c]

        sel = mask_flat > thresh
        if not sel.any():
            print('Failed to find prototypes')
        protos = jnp.asarray(np.asarray(feats)[sel])          # [K, nc]

        if mode == 'gridconv':
            pro_n = safe_norm(protos)
        else:  # gridconv+
            glb_proto = (jnp.sum(sup_x * sup_y, axis=(-1, -2)) /
                         (jnp.sum(sup_y, axis=(-1, -2)) + 1e-5))   # [shot, nc]
            pro_n = safe_norm(jnp.concatenate([protos, glb_proto], axis=0))
        return pro_n, jnp.asarray(resized_proto_grid), jnp.asarray(non_zero)

    def get_prediction_from_prototypes(self, prototypes, query, mode, vis_sim=False):
        if mode not in ('gridconv', 'gridconv+'):
            # TODO(synk): 'mask' prediction mode not implemented in this script.
            raise NotImplementedError(mode)
        # query: [1, nc, h, w]  ->  [nc, HW]  (channels on sublanes, no transpose)
        _, nc, h, w = query.shape
        q_cl = query[0].reshape(nc, h * w)
        pred, assign, dists = _run_pred_kernel(q_cl, prototypes, want_dists=vis_sim)
        pred_grid = pred.reshape(1, 1, h, w)
        debug_assign = assign.reshape(1, h, w)
        vis_dict = {'proto_assign': debug_assign}
        if vis_sim:
            # raw similarity volume [1, P, h, w], emitted as a fused kernel output
            vis_dict['raw_local_sims'] = dists.reshape(1, -1, h, w)
        return pred_grid, [debug_assign], vis_dict

    def forward(self, qry, sup_x, sup_y, mode, thresh, isval=False,
                val_wsize=None, vis_sim=False, **kwargs):
        qry = jnp.squeeze(qry, axis=1)                            # [1, nc, h, w]
        sup_x = jnp.squeeze(jnp.squeeze(sup_x, axis=0), axis=1)   # [shot, nc, h, w]
        sup_y = jnp.squeeze(sup_y, axis=0)                        # [shot, nb, h, w]

        if val_wsize is None:
            val_wsize = self.kernel_size[0]
        sup_y = sup_y.reshape(sup_x.shape[0], 1, sup_x.shape[-2], sup_x.shape[-1])

        pro_n, proto_grid, proto_indices = self.get_prototypes(
            sup_x, sup_y, mode, val_wsize, thresh, isval)

        # (query safe_norm is fused inside the Pallas kernel)
        pred_grid, debug_assign, vis_dict = self.get_prediction_from_prototypes(
            pro_n, qry, mode, vis_sim=vis_sim)

        # stash for the reference check in __main__
        self._last_pro_n = pro_n
        self._last_qry = qry
        return pred_grid, debug_assign, vis_dict, proto_grid


# ------------------------------ reference --------------------------------- #

def _bf16_round(x):
    return np.asarray(jnp.asarray(x).astype(jnp.bfloat16).astype(jnp.float32)
                      ).astype(np.float64)


def _reference_pred(pro_n, qry):
    """Numpy replica of the torch 'gridconv+' prediction path, mirroring the
    kernel numerics: the query enters the kernel as bf16 (so both the norm and
    the MXU matmul see bf16-rounded values); reductions/softmax in f64."""
    q_b = _bf16_round(np.asarray(qry, dtype=np.float32)[0])     # [C, h, w]
    qn = np.maximum(np.sqrt((q_b * q_b).sum(axis=0)), 1e-4)     # [h, w]
    p_b = _bf16_round(pro_n)                                    # [P, C]
    dists = np.einsum('pc,chw->phw', p_b, q_b) * (20.0 / qn)[None]   # [P, h, w]
    m = dists.max(axis=0, keepdims=True)
    e = np.exp(dists - m)
    soft = e / e.sum(axis=0, keepdims=True)
    pred = (soft * dists).sum(axis=0)[None, None]               # [1,1,h,w]
    assign = dists.argmax(axis=0).astype(np.float32)[None]      # [1,h,w]
    return pred, assign, dists[None]                            # dists: [1,P,h,w]


# -------------------------------- main ------------------------------------ #

if __name__ == "__main__":
    H = W = 16
    C = 32
    SHOT = 1

    module = MultiProtoAsConv(proto_grid=(8, 8), feature_hw=(H, W), embed_dim=C)

    key = jax.random.PRNGKey(0)
    k_q, k_s = jax.random.split(key)
    qry = jax.random.normal(k_q, (1, 1, C, H, W), dtype=jnp.float32)          # [way, nb, nc, h, w]
    sup_x = jax.random.normal(k_s, (1, SHOT, 1, C, H, W), dtype=jnp.float32)  # [way, shot, nb, nc, h, w]

    # deterministic binary support mask: a centered 8x8 foreground blob
    sup_y_np = np.zeros((1, SHOT, 1, H, W), dtype=np.float32)
    sup_y_np[..., 4:12, 4:12] = 1.0
    sup_y = jnp.asarray(sup_y_np)                                             # [way, shot, nb, h, w]

    pred_grid, debug_assign, vis_dict, proto_grid = module.forward(
        qry, sup_x, sup_y, mode='gridconv+', thresh=0.95, vis_sim=True)

    jax.block_until_ready(pred_grid)
    jax.block_until_ready(debug_assign[0])
    jax.block_until_ready(vis_dict['raw_local_sims'])

    # correctness check against a numpy reference of the hot path
    ref_pred, ref_assign, ref_dists = _reference_pred(module._last_pro_n, module._last_qry)
    P = int(module._last_pro_n.shape[0])

    assert pred_grid.shape == (1, 1, H, W)
    assert debug_assign[0].shape == (1, H, W)
    assert vis_dict['raw_local_sims'].shape == (1, P, H, W)
    assert proto_grid.shape == (1, 1, H, W)

    np.testing.assert_allclose(np.asarray(pred_grid), ref_pred, rtol=1e-2, atol=2e-2)
    np.testing.assert_allclose(np.asarray(vis_dict['raw_local_sims']),
                               ref_dists, rtol=1e-2, atol=5e-2)

    # argmax: allow near-ties to resolve either way, but the kernel-picked
    # prototype must be (numerically) maximal in the reference.
    ker_idx = np.asarray(debug_assign[0]).astype(np.int64)[0]        # [h, w]
    assert ker_idx.min() >= 0 and ker_idx.max() < P
    ref_d = ref_dists[0]                                             # [P, h, w]
    picked = np.take_along_axis(ref_d, ker_idx[None], axis=0)[0]
    assert np.all(picked >= ref_d.max(axis=0) - 5e-2)

    print("KERNEL_OK")
</pallas_src>

<mosaic_0001>
module attributes {stable_mosaic.version = 11 : i64} {
  func.func @kernel(%arg0: i32, %arg1: memref<1xi32, #tpu.memory_space<smem>>, %arg2: memref<32x256xbf16, #tpu.memory_space<vmem>>, %arg3: memref<32x32xbf16, #tpu.memory_space<vmem>>, %arg4: memref<1x256xf32, #tpu.memory_space<vmem>>, %arg5: memref<1x256xf32, #tpu.memory_space<vmem>>, %arg6: memref<32x256xbf16, #tpu.memory_space<vmem>>) attributes {dimension_semantics = [#tpu.dimension_semantics<parallel>], iteration_bounds = array<i64: 1>, scalar_prefetch = 1 : i64, scratch_operands = 0 : i64, tpu.core_type = #tpu.core_type<tc>, window_params = [{transform_indices = @transform_0, window_bounds = array<i64: 32, 256>}, {pipeline_mode = #tpu.pipeline_mode<synchronous>, transform_indices = @transform_1, window_bounds = array<i64: 32, 32>}, {transform_indices = @transform_2, window_bounds = array<i64: 1, 256>}, {transform_indices = @transform_3, window_bounds = array<i64: 1, 256>}, {transform_indices = @transform_4, window_bounds = array<i64: 32, 256>}]} {
    %c0 = arith.constant 0 : index
    %0 = memref.load %arg1[%c0] : memref<1xi32, #tpu.memory_space<smem>>
    %c0_0 = arith.constant 0 : index
    %c0_1 = arith.constant 0 : index
    %1 = vector.load %arg2[%c0_0, %c0_1] : memref<32x256xbf16, #tpu.memory_space<vmem>>, vector<32x256xbf16>
    %2 = arith.extf %1 : vector<32x256xbf16> to vector<32x256xf32>
    %cst = arith.constant 1.000000e+00 : f32
    %3 = vector.broadcast %cst : f32 to vector<1x32xf32>
    %4 = arith.mulf %2, %2 : vector<32x256xf32>
    %cst_2 = arith.constant dense<0.000000e+00> : vector<1x256xf32>
    %5 = tpu.matmul %3, %4, %cst_2 {dimension_numbers = #tpu.dot_dimension_numbers<[1], [0], [0], [1], [0, 0, 1, 1], [], []>} : vector<1x32xf32>, vector<32x256xf32>, vector<1x256xf32> -> vector<1x256xf32>
    %cst_3 = arith.constant 9.99999993E-9 : f32
    %6 = vector.broadcast %cst_3 : f32 to vector<1x256xf32>
    %7 = arith.maximumf %5, %6 : vector<1x256xf32>
    %8 = math.rsqrt %7 : vector<1x256xf32>
    %cst_4 = arith.constant 2.000000e+01 : f32
    %9 = vector.broadcast %cst_4 : f32 to vector<1x256xf32>
    %10 = arith.mulf %9, %8 : vector<1x256xf32>
    %c0_5 = arith.constant 0 : index
    %c0_6 = arith.constant 0 : index
    %11 = vector.load %arg3[%c0_5, %c0_6] : memref<32x32xbf16, #tpu.memory_space<vmem>>, vector<32x32xbf16>
    %cst_7 = arith.constant dense<0.000000e+00> : vector<32x256xf32>
    %12 = tpu.matmul %11, %1, %cst_7 {dimension_numbers = #tpu.dot_dimension_numbers<[1], [0], [0], [1], [0, 0, 1, 1], [], []>} : vector<32x32xbf16>, vector<32x256xbf16>, vector<32x256xf32> -> vector<32x256xf32>
    %13 = vector.broadcast %10 : vector<1x256xf32> to vector<32x256xf32>
    %14 = arith.mulf %12, %13 : vector<32x256xf32>
    %15 = tpu.iota {dimensions = array<i32: 0>} : vector<32x256xi32>
    %16 = vector.broadcast %0 : i32 to vector<32x256xi32>
    %17 = arith.cmpi slt, %15, %16 : vector<32x256xi32>
    %cst_8 = arith.constant -1.000000e+30 : f32
    %18 = vector.broadcast %cst_8 : f32 to vector<32x256xf32>
    %19 = arith.select %17, %14, %18 : vector<32x256xi1>, vector<32x256xf32>
    %cst_9 = arith.constant dense<0xFF800000> : vector<256xf32>
    %20 = vector.multi_reduction <maximumf>, %19, %cst_9 [0] : vector<32x256xf32> to vector<256xf32>
    %21 = vector.shape_cast %20 : vector<256xf32> to vector<1x256xf32>
    %22 = vector.broadcast %21 : vector<1x256xf32> to vector<32x256xf32>
    %23 = arith.subf %19, %22 : vector<32x256xf32>
    %24 = math.exp %23 : vector<32x256xf32>
    %cst_10 = arith.constant 1.000000e+00 : f32
    %25 = vector.broadcast %cst_10 : f32 to vector<1x32xf32>
    %cst_11 = arith.constant dense<0.000000e+00> : vector<1x256xf32>
    %26 = tpu.matmul %25, %24, %cst_11 {dimension_numbers = #tpu.dot_dimension_numbers<[1], [0], [0], [1], [0, 0, 1, 1], [], []>} : vector<1x32xf32>, vector<32x256xf32>, vector<1x256xf32> -> vector<1x256xf32>
    %27 = arith.mulf %24, %14 : vector<32x256xf32>
    %cst_12 = arith.constant dense<0.000000e+00> : vector<1x256xf32>
    %28 = tpu.matmul %25, %27, %cst_12 {dimension_numbers = #tpu.dot_dimension_numbers<[1], [0], [0], [1], [0, 0, 1, 1], [], []>} : vector<1x32xf32>, vector<32x256xf32>, vector<1x256xf32> -> vector<1x256xf32>
    %29 = arith.divf %28, %26 : vector<1x256xf32>
    %c0_13 = arith.constant 0 : index
    %c0_14 = arith.constant 0 : index
    %30 = vector.load %arg4[%c0_13, %c0_14] : memref<1x256xf32, #tpu.memory_space<vmem>>, vector<1x256xf32>
    tpu.vector_store %arg4[%c0_13, %c0_14], %29 {strides = array<i32>} : memref<1x256xf32, #tpu.memory_space<vmem>>, vector<1x256xf32>,
    %31 = vector.broadcast %21 : vector<1x256xf32> to vector<32x256xf32>
    %32 = arith.cmpf oeq, %19, %31 : vector<32x256xf32>
    %c32_i32 = arith.constant 32 : i32
    %33 = vector.broadcast %c32_i32 : i32 to vector<32x256xi32>
    %34 = arith.select %32, %15, %33 : vector<32x256xi1>, vector<32x256xi32>
    %cst_15 = arith.constant dense<2147483647> : vector<256xi32>
    %35 = vector.multi_reduction <minsi>, %34, %cst_15 [0] : vector<32x256xi32> to vector<256xi32>
    %36 = vector.shape_cast %35 : vector<256xi32> to vector<1x256xi32>
    %37 = arith.sitofp %36 : vector<1x256xi32> to vector<1x256xf32>
    %c0_16 = arith.constant 0 : index
    %c0_17 = arith.constant 0 : index
    %38 = vector.load %arg5[%c0_16, %c0_17] : memref<1x256xf32, #tpu.memory_space<vmem>>, vector<1x256xf32>
    tpu.vector_store %arg5[%c0_16, %c0_17], %37 {strides = array<i32>} : memref<1x256xf32, #tpu.memory_space<vmem>>, vector<1x256xf32>,
    %39 = arith.truncf %14 : vector<32x256xf32> to vector<32x256xbf16>
    %c0_18 = arith.constant 0 : index
    %c0_19 = arith.constant 0 : index
    %40 = vector.load %arg6[%c0_18, %c0_19] : memref<32x256xbf16, #tpu.memory_space<vmem>>, vector<32x256xbf16>
    tpu.vector_store %arg6[%c0_18, %c0_19], %39 {strides = array<i32>} : memref<32x256xbf16, #tpu.memory_space<vmem>>, vector<32x256xbf16>,
    return
  }
  func.func @transform_0(%arg0: i32, %arg1: memref<1xi32, #tpu.memory_space<smem>>) -> (i32, i32) {
    %c0_i32 = arith.constant 0 : i32
    %c0_i32_0 = arith.constant 0 : i32
    return %c0_i32, %arg0 : i32, i32
  }
  func.func @transform_1(%arg0: i32, %arg1: memref<1xi32, #tpu.memory_space<smem>>) -> (i32, i32) {
    %c0_i32 = arith.constant 0 : i32
    %c0_i32_0 = arith.constant 0 : i32
    %c0_i32_1 = arith.constant 0 : i32
    return %c0_i32, %c0_i32_0 : i32, i32
  }
  func.func @transform_2(%arg0: i32, %arg1: memref<1xi32, #tpu.memory_space<smem>>) -> (i32, i32) {
    %c0_i32 = arith.constant 0 : i32
    %c0_i32_0 = arith.constant 0 : i32
    return %c0_i32, %arg0 : i32, i32
  }
  func.func @transform_3(%arg0: i32, %arg1: memref<1xi32, #tpu.memory_space<smem>>) -> (i32, i32) {
    %c0_i32 = arith.constant 0 : i32
    %c0_i32_0 = arith.constant 0 : i32
    return %c0_i32, %arg0 : i32, i32
  }
  func.func @transform_4(%arg0: i32, %arg1: memref<1xi32, #tpu.memory_space<smem>>) -> (i32, i32) {
    %c0_i32 = arith.constant 0 : i32
    %c0_i32_0 = arith.constant 0 : i32
    return %c0_i32, %arg0 : i32, i32
  }
}

</mosaic_0001>

<llo_original>
// kernel: tpu_custom_call.1
$region0: #{tpu_custom_call.1}
  #allocation0 [shape = 'u32[]', space=smem, size = 0x4, offset = 0x4, fixed_abs, tag = 'smem constant byte address 0x4 - core index']
  #allocation1 [shape = 'u32[144,128]{1,0:T(1,128)}', space=vmem, size = 0x12000, scoped, tag = 'internal scratch']
  #allocation2 [shape = 's32[1]{0}', space=sflag, size = 0x4, scoped, tag = 'scoped memory for tpu_custom_call.1']
  #allocation3 [shape = 's32[1]{0:T(128)S(6)}', space=smem, size = 0x200, scoped, tag = 'prefetched SMEM operand 0']
  %s0 = inlined_call_operand.<no memory space> [shape: s32[1], index: 0, kind: input, shape index: {}]
  %s1 = inlined_call_operand.hbm [shape: bf16[32,256], index: 1, kind: input, shape index: {}]
  %s2 = inlined_call_operand.hbm [shape: bf16[32,32], index: 2, kind: input, shape index: {}]
  %s3 = inlined_call_operand.hbm [shape: f32[1,256], index: 3, kind: output, shape index: {0}]
  %s4 = inlined_call_operand.hbm [shape: f32[1,256], index: 4, kind: output, shape index: {1}]
  %s5 = inlined_call_operand.hbm [shape: bf16[32,256], index: 5, kind: output, shape index: {2}]
  %6 = xla_tuple %s3, %s4, %s5
  %s7 = sld [smem:[#allocation0]]
  $region42: #{tpu_custom_call.1} parent=0
    _
  %s9 = ssub.s32 1, %s7
  %s10 = scalar_select 0, %s9, %s7
  %11 = sst [smem:[#allocation3]] %s0
  $region1: #{tpu_custom_call.1} parent=0
    #allocation4 [shape = 'u8[16384]{0}', space=vmem, size = 0x4000, scoped, tag = 'input window, operand 1, single buffered']
    #allocation5 [shape = 's32[1]{0}', space=sflag, size = 0x4, scoped, tag = 'scoped memory for tpu_custom_call.1']
    #allocation6 [shape = 's32[1]{0}', space=sflag, size = 0x4, scoped, tag = 'scoped memory for tpu_custom_call.1']
    #allocation7 [shape = 'u8[8192]{0}', space=vmem, size = 0x2000, scoped, tag = 'input window, operand 2, single buffered']
    #allocation8 [shape = 's32[1]{0}', space=sflag, size = 0x4, scoped, tag = 'scoped memory for tpu_custom_call.1']
    #allocation9 [shape = 'u8[1024]{0}', space=vmem, size = 0x400, scoped, tag = 'output window, operand 0, single buffered']
    #allocation10 [shape = 'u8[1024]{0}', space=vmem, size = 0x400, scoped, tag = 'output window, operand 1, single buffered']
    #allocation11 [shape = 's32[1]{0}', space=sflag, size = 0x4, scoped, tag = 'scoped memory for tpu_custom_call.1']
    #allocation12 [shape = 'u8[16384]{0}', space=vmem, size = 0x4000, scoped, tag = 'output window, operand 2, single buffered']
    %12 = vsyncpa [#allocation5], 0
    %13 = vsyncpa [#allocation8], 0
    %14 = vsyncpa [#allocation6], 0
    %15 = vsyncpa [#allocation11], 0
    // Predicated region
    $region2: #{tpu_custom_call.1} parent=1 // pred_check
      _
    $region3: #{tpu_custom_call.1} parent=1 // pred_check_branch
      %17 = sbr.rel (0) target = $region5
    $region4: #{tpu_custom_call.1} parent=1 // pred_region
      %s19 = ssub.s32 512, 512
      %20 = vsyncadd [#allocation5], %s19
      %s21 = sshll.u32 [#allocation4], 4
      %s22 = int_to_ptr.vmem [resolvable:$true] %s21
      %27 = dma.hbm_to_vmem [thread:$0]  %s1, 512, %s22, [#allocation5], 128, 128, 8
    $region5: #{tpu_custom_call.1} parent=1 // pred_fallthru
      _
    // Predicated region
    $region6: #{tpu_custom_call.1} parent=1 // pred_check
      _
    $region7: #{tpu_custom_call.1} parent=1 // pred_check_branch
      %29 = sbr.rel (0) target = $region9
    $region8: #{tpu_custom_call.1} parent=1 // pred_region
      %s31 = ssub.s32 256, 256
      %32 = vsyncadd [#allocation8], %s31
      %s33 = sshll.u32 [#allocation7], 4
      %s34 = int_to_ptr.vmem [resolvable:$true] %s33
      %39 = dma.hbm_to_vmem [thread:$0]  %s2, 256, %s34, [#allocation8], 64, 64, 4
    $region9: #{tpu_custom_call.1} parent=1 // pred_fallthru
      _
    // Predicated region
    $region10: #{tpu_custom_call.1} parent=1 // pred_check
      _
    $region11: #{tpu_custom_call.1} parent=1 // pred_check_branch
      %41 = sbr.rel (0) target = $region13
    $region12: #{tpu_custom_call.1} parent=1 // pred_region
      %42 = dma.done [#allocation5], 512
    $region13: #{tpu_custom_call.1} parent=1 // pred_fallthru
      _
    // Predicated region
    $region14: #{tpu_custom_call.1} parent=1 // pred_check
      _
    $region15: #{tpu_custom_call.1} parent=1 // pred_check_branch
      %44 = sbr.rel (0) target = $region17
    $region16: #{tpu_custom_call.1} parent=1 // pred_region
      %45 = dma.done [#allocation8], 256
    $region17: #{tpu_custom_call.1} parent=1 // pred_fallthru
      _
    %s47 = sld [smem:[#allocation3]]
    %v48 = vld [vmem:[#allocation4] sm:$0xff]
    %v49 = vld [vmem:[#allocation4 + $0x8] sm:$0xff]
    %v50 = vld [vmem:[#allocation4 + $0x10] sm:$0xff]
    %v51 = vld [vmem:[#allocation4 + $0x18] sm:$0xff]
    %v52 = vunpack.c.l.bf16 %v48
    %v53 = vunpack.c.h.bf16 %v48
    %v54 = vunpack.c.l.bf16 %v49
    %v55 = vunpack.c.h.bf16 %v49
    %v56 = vunpack.c.l.bf16 %v50
    %v57 = vunpack.c.h.bf16 %v50
    %v58 = vunpack.c.l.bf16 %v51
    %v59 = vunpack.c.h.bf16 %v51
    %v60 = vmul.f32 %v52, %v52
    %v61 = vmul.f32 %v53, %v53
    %v62 = vmul.f32 %v54, %v54
    %v63 = vmul.f32 %v55, %v55
    %v64 = vmul.f32 %v56, %v56
    %v65 = vmul.f32 %v57, %v57
    %v66 = vmul.f32 %v58, %v58
    %v67 = vmul.f32 %v59, %v59
    %vm68 = vcmask 261120
    %v70 = vsel %vm68, 1.0, 0
    %72 = vmatprep.subr.mxu0 0.0
    %73 = vmatpush1.msra.mxu0 0.0
    %74 = vmatprep.subr.mxu0 0.0
    %75 = vmatpush1.msra.mxu0 0.0
    %76 = vmatprep.subr.mxu0 0.0
    %77 = vmatpush1.msra.mxu0 0.0
    %78 = vmatprep.subr.mxu0 0.0
    %79 = vmatpush1.msra.mxu0 0.0
    %80 = vmatprep.subr.mxu0 0.0
    %81 = vmatpush1.msra.mxu0 0.0
    %82 = vmatprep.subr.mxu0 0.0
    %83 = vmatpush1.msra.mxu0 0.0
    %84 = vmatprep.subr.mxu0 0.0
    %85 = vmatpush1.msra.mxu0 0.0
    %86 = vmatprep.subr.mxu0 0.0
    %87 = vmatpush1.msra.mxu0 0.0
    %88 = vmatprep.subr.mxu0 0.0
    %89 = vmatpush1.msra.mxu0 0.0
    %90 = vmatprep.subr.mxu0 0.0
    %91 = vmatpush1.msra.mxu0 0.0
    %92 = vmatprep.subr.mxu0 0.0
    %93 = vmatpush1.msra.mxu0 0.0
    %94 = vmatprep.subr.mxu0 0.0
    %95 = vmatpush1.msra.mxu0 0.0
    %96 = vmatprep.subr.mxu0 %v67
    %97 = vmatpush1.msra.mxu0 %v66
    %98 = vmatprep.subr.mxu0 %v65
    %99 = vmatpush1.msra.mxu0 %v64
    %100 = vmatprep.subr.mxu0 %v63
    %101 = vmatpush1.msra.mxu0 %v62
    %102 = vmatprep.subr.mxu0 %v61
    %103 = vmatpush1.msra.mxu0 %v60
    %104 = vmatprep.subr.mxu0 0.0
    %105 = vmatpush2.msra.mxu0 0.0
    %106 = vmatprep.subr.mxu0 0.0
    %107 = vmatpush2.msra.mxu0 0.0
    %108 = vmatprep.subr.mxu0 0.0
    %109 = vmatpush2.msra.mxu0 0.0
    %110 = vmatprep.subr.mxu0 0.0
    %111 = vmatpush2.msra.mxu0 0.0
    %112 = vmatprep.subr.mxu0 0.0
    %113 = vmatpush2.msra.mxu0 0.0
    %114 = vmatprep.subr.mxu0 0.0
    %115 = vmatpush2.msra.mxu0 0.0
    %116 = vmatprep.subr.mxu0 0.0
    %117 = vmatpush2.msra.mxu0 0.0
    %118 = vmatprep.subr.mxu0 0.0
    %119 = vmatpush2.msra.mxu0 0.0
    %120 = vmatprep.subr.mxu0 0.0
    %121 = vmatpush2.msra.mxu0 0.0
    %122 = vmatprep.subr.mxu0 0.0
    %123 = vmatpush2.msra.mxu0 0.0
    %124 = vmatprep.subr.mxu0 0.0
    %125 = vmatpush2.msra.mxu0 0.0
    %126 = vmatprep.subr.mxu0 0.0
    %127 = vmatpush2.msra.mxu0 0.0
    %128 = vmatprep.subr.mxu0 0.0
    %129 = vmatpush2.msra.mxu0 0.0
    %130 = vmatprep.subr.mxu0 0.0
    %131 = vmatpush2.msra.mxu0 0.0
    %132 = vmatprep.subr.mxu0 0.0
    %133 = vmatpush2.msra.mxu0 0.0
    %134 = vmatprep.subr.mxu0 0.0
    %135 = vmatpush2.msra.mxu0 0.0
    %136 = vmatprep.mubr.f32.mxu0 0.0
    %137 = vmatmul.mubr.f32.gmra.mxu0 %v70
    %v138 = vpop.f32.mrf.mxu0
    %v139 = vadd.f32 0.0, %v138
    %v140 = vpop.f32.mrf.mxu0
    %v141 = vadd.f32 0.0, %v140
    %142 = vdwg.mxu0
    %v143 = vmax.f32 %v139, 1e-08
    %v144 = vmax.f32 %v141, 1e-08
    %v145 = vrsqrt.pop %v143
    %v146 = vrsqrt.pop %v144
    %v147 = vmul.f32 %v145, 20.0
    %v148 = vmul.f32 %v146, 20.0
    %v149 = vld [vmem:[#allocation7] sm:$0xf]
    %v150 = vld [vmem:[#allocation7 + $0x4] sm:$0xf]
    %v151 = vld [vmem:[#allocation7 + $0x8] sm:$0xf]
    %v152 = vld [vmem:[#allocation7 + $0xc] sm:$0xf]
    %v157 = vunpack.c.l.b16 %v149
    %v158 = vunpack.c.l.b16 %v150
    %v159 = vunpack.c.l.b16 %v151
    %v160 = vunpack.c.l.b16 %v152
    %v161 = vpack.c.b16 %v158, %v157
    %v162 = vpack.c.b16 %v160, %v159
    %v167 = vunpack.c.l.b16 %v48
    %v168 = vunpack.c.h.b16 %v48
    %v169 = vunpack.c.l.b16 %v49
    %v170 = vunpack.c.h.b16 %v49
    %v171 = vunpack.c.l.b16 %v50
    %v172 = vunpack.c.h.b16 %v50
    %v173 = vunpack.c.l.b16 %v51
    %v174 = vunpack.c.h.b16 %v51
    %v175 = vpack.c.b16 %v169, %v167
    %v176 = vpack.c.b16 %v170, %v168
    %v177 = vpack.c.b16 %v173, %v171
    %v178 = vpack.c.b16 %v174, %v172
    %v184 = vsel %vm68, %v161, 0
    %v187 = vsel %vm68, %v162, 0
    %189 = vmatprep.subr.bf16.mxu0 0
    %190 = vmatpush1.bf16.msra.mxu0 0
    %191 = vmatprep.subr.bf16.mxu0 0
    %192 = vmatpush1.bf16.msra.mxu0 0
    %193 = vmatprep.subr.bf16.mxu0 0
    %194 = vmatpush1.bf16.msra.mxu0 0
    %195 = vmatprep.subr.bf16.mxu0 0
    %196 = vmatpush1.bf16.msra.mxu0 0
    %197 = vmatprep.subr.bf16.mxu0 0
    %198 = vmatpush1.bf16.msra.mxu0 0
    %199 = vmatprep.subr.bf16.mxu0 0
    %200 = vmatpush1.bf16.msra.mxu0 0
    %201 = vmatprep.subr.bf16.mxu0 %v178
    %202 = vmatpush1.bf16.msra.mxu0 %v177
    %203 = vmatprep.subr.bf16.mxu0 %v176
    %204 = vmatpush1.bf16.msra.mxu0 %v175
    %205 = vmatprep.subr.bf16.mxu0 0
    %206 = vmatpush2.bf16.msra.mxu0 0
    %207 = vmatprep.subr.bf16.mxu0 0
    %208 = vmatpush2.bf16.msra.mxu0 0
    %209 = vmatprep.subr.bf16.mxu0 0
    %210 = vmatpush2.bf16.msra.mxu0 0
    %211 = vmatprep.subr.bf16.mxu0 0
    %212 = vmatpush2.bf16.msra.mxu0 0
    %213 = vmatprep.subr.bf16.mxu0 0
    %214 = vmatpush2.bf16.msra.mxu0 0
    %215 = vmatprep.subr.bf16.mxu0 0
    %216 = vmatpush2.bf16.msra.mxu0 0
    %217 = vmatprep.subr.bf16.mxu0 0
    %218 = vmatpush2.bf16.msra.mxu0 0
    %219 = vmatprep.subr.bf16.mxu0 0
    %220 = vmatpush2.bf16.msra.mxu0 0
    %221 = vmatprep.mubr.bf16.mxu0 0
    %222 = vmatmul.mubr.bf16.gmra.mxu0 %v184
    %v223 = vpop.f32.mrf.mxu0
    %v224 = vadd.f32 0.0, %v223
    %v225 = vpop.f32.mrf.mxu0
    %v226 = vadd.f32 0.0, %v225
    %v227 = vpop.f32.mrf.mxu0
    %v228 = vadd.f32 0.0, %v227
    %v229 = vpop.f32.mrf.mxu0
    %v230 = vadd.f32 0.0, %v229
    %231 = vmatprep.mubr.bf16.mxu0 0
    %232 = vmatmul.mubr.bf16.gmra.mxu0 %v187
    %v233 = vpop.f32.mrf.mxu0
    %v234 = vadd.f32 0.0, %v233
    %v235 = vpop.f32.mrf.mxu0
    %v236 = vadd.f32 0.0, %v235
    %v237 = vpop.f32.mrf.mxu0
    %v238 = vadd.f32 0.0, %v237
    %v239 = vpop.f32.mrf.mxu0
    %v240 = vadd.f32 0.0, %v239
    %241 = vdwg.mxu0
    %v242 = vlaneseq
    %v243 = vshrl.u32 %v242, 7
    %v244 = vsub.s32 0, %v243
    %v245 = vrot.slane %v147, %v244
    %v246 = vlaneseq
    %v247 = vshrl.u32 %v246, 7
    %v248 = vsub.s32 0, %v247
    %v249 = vrot.slane %v148, %v248
    %v250 = vmul.f32 %v224, %v245
    %v251 = vmul.f32 %v226, %v249
    %v252 = vmul.f32 %v228, %v245
    %v253 = vmul.f32 %v230, %v249
    %v254 = vmul.f32 %v234, %v245
    %v255 = vmul.f32 %v236, %v249
    %v256 = vmul.f32 %v238, %v245
    %v257 = vmul.f32 %v240, %v249
    %v258 = vlaneseq
    %v259 = vshrl.u32 %v258, 7
    %v260 = vadd.s32 %v259, 8
    %v261 = vadd.s32 %v259, 16
    %v262 = vadd.s32 %v259, 24
    %v263 = vstv %s47
    %vm264 = vcmp.lt.s32.totalorder %v259, %v263
    %vm265 = vcmp.lt.s32.totalorder %v260, %v263
    %vm266 = vcmp.lt.s32.totalorder %v261, %v263
    %vm267 = vcmp.lt.s32.totalorder %v262, %v263
    %v268 = vsel %vm264, %v250, -1e+30
    %v269 = vsel %vm264, %v251, -1e+30
    %v270 = vsel %vm265, %v252, -1e+30
    %v271 = vsel %vm265, %v253, -1e+30
    %v272 = vsel %vm266, %v254, -1e+30
    %v273 = vsel %vm266, %v255, -1e+30
    %v274 = vsel %vm267, %v256, -1e+30
    %v275 = vsel %vm267, %v257, -1e+30
    %v276 = vmax.f32 %v268, %v272
    %v277 = vmax.f32 %v270, %v274
    %v278 = vmax.f32 %v276, %v277
    %v279 = vrot.slane %v278, 4
    %v280 = vmax.f32 %v278, %v279
    %v281 = vrot.slane %v280, 2
    %v282 = vmax.f32 %v280, %v281
    %v283 = vrot.slane %v282, 1
    %v284 = vmax.f32 %v282, %v283
    %v285 = vmax.f32 %v269, %v273
    %v286 = vmax.f32 %v271, %v275
    %v287 = vmax.f32 %v285, %v286
    %v288 = vrot.slane %v287, 4
    %v289 = vmax.f32 %v287, %v288
    %v290 = vrot.slane %v289, 2
    %v291 = vmax.f32 %v289, %v290
    %v292 = vrot.slane %v291, 1
    %v293 = vmax.f32 %v291, %v292
    %v294 = vsub.f32 %v268, %v284
    %v295 = vsub.f32 %v269, %v293
    %v296 = vsub.f32 %v270, %v284
    %v297 = vsub.f32 %v271, %v293
    %v298 = vsub.f32 %v272, %v284
    %v299 = vsub.f32 %v273, %v293
    %v300 = vsub.f32 %v274, %v284
    %v301 = vsub.f32 %v275, %v293
    %v302 = vmul.f32 %v294, 1.442695
    %v303 = vpow.pop %v302
    %v304 = vmul.f32 %v295, 1.442695
    %v305 = vpow.pop %v304
    %v306 = vmul.f32 %v296, 1.442695
    %v307 = vpow.pop %v306
    %v308 = vmul.f32 %v297, 1.442695
    %v309 = vpow.pop %v308
    %v310 = vmul.f32 %v298, 1.442695
    %v311 = vpow.pop %v310
    %v312 = vmul.f32 %v299, 1.442695
    %v313 = vpow.pop %v312
    %v314 = vmul.f32 %v300, 1.442695
    %v315 = vpow.pop %v314
    %v316 = vmul.f32 %v301, 1.442695
    %v317 = vpow.pop %v316
    %318 = vmatprep.subr.mxu0 0.0
    %319 = vmatpush1.msra.mxu0 0.0
    %320 = vmatprep.subr.mxu0 0.0
    %321 = vmatpush1.msra.mxu0 0.0
    %322 = vmatprep.subr.mxu0 0.0
    %323 = vmatpush1.msra.mxu0 0.0
    %324 = vmatprep.subr.mxu0 0.0
    %325 = vmatpush1.msra.mxu0 0.0
    %326 = vmatprep.subr.mxu0 0.0
    %327 = vmatpush1.msra.mxu0 0.0
    %328 = vmatprep.subr.mxu0 0.0
    %329 = vmatpush1.msra.mxu0 0.0
    %330 = vmatprep.subr.mxu0 0.0
    %331 = vmatpush1.msra.mxu0 0.0
    %332 = vmatprep.subr.mxu0 0.0
    %333 = vmatpush1.msra.mxu0 0.0
    %334 = vmatprep.subr.mxu0 0.0
    %335 = vmatpush1.msra.mxu0 0.0
    %336 = vmatprep.subr.mxu0 0.0
    %337 = vmatpush1.msra.mxu0 0.0
    %338 = vmatprep.subr.mxu0 0.0
    %339 = vmatpush1.msra.mxu0 0.0
    %340 = vmatprep.subr.mxu0 0.0
    %341 = vmatpush1.msra.mxu0 0.0
    %342 = vmatprep.subr.mxu0 %v317
    %343 = vmatpush1.msra.mxu0 %v315
    %344 = vmatprep.subr.mxu0 %v313
    %345 = vmatpush1.msra.mxu0 %v311
    %346 = vmatprep.subr.mxu0 %v309
    %347 = vmatpush1.msra.mxu0 %v307
    %348 = vmatprep.subr.mxu0 %v305
    %349 = vmatpush1.msra.mxu0 %v303
    %350 = vmatprep.subr.mxu0 0.0
    %351 = vmatpush2.msra.mxu0 0.0
    %352 = vmatprep.subr.mxu0 0.0
    %353 = vmatpush2.msra.mxu0 0.0
    %354 = vmatprep.subr.mxu0 0.0
    %355 = vmatpush2.msra.mxu0 0.0
    %356 = vmatprep.subr.mxu0 0.0
    %357 = vmatpush2.msra.mxu0 0.0
    %358 = vmatprep.subr.mxu0 0.0
    %359 = vmatpush2.msra.mxu0 0.0
    %360 = vmatprep.subr.mxu0 0.0
    %361 = vmatpush2.msra.mxu0 0.0
    %362 = vmatprep.subr.mxu0 0.0
    %363 = vmatpush2.msra.mxu0 0.0
    %364 = vmatprep.subr.mxu0 0.0
    %365 = vmatpush2.msra.mxu0 0.0
    %366 = vmatprep.subr.mxu0 0.0
    %367 = vmatpush2.msra.mxu0 0.0
    %368 = vmatprep.subr.mxu0 0.0
    %369 = vmatpush2.msra.mxu0 0.0
    %370 = vmatprep.subr.mxu0 0.0
    %371 = vmatpush2.msra.mxu0 0.0
    %372 = vmatprep.subr.mxu0 0.0
    %373 = vmatpush2.msra.mxu0 0.0
    %374 = vmatprep.subr.mxu0 0.0
    %375 = vmatpush2.msra.mxu0 0.0
    %376 = vmatprep.subr.mxu0 0.0
    %377 = vmatpush2.msra.mxu0 0.0
    %378 = vmatprep.subr.mxu0 0.0
    %379 = vmatpush2.msra.mxu0 0.0
    %380 = vmatprep.subr.mxu0 0.0
    %381 = vmatpush2.msra.mxu0 0.0
    %382 = vmatprep.mubr.f32.mxu0 0.0
    %383 = vmatmul.mubr.f32.gmra.mxu0 %v70
    %v384 = vpop.f32.mrf.mxu0
    %v385 = vadd.f32 0.0, %v384
    %v386 = vpop.f32.mrf.mxu0
    %v387 = vadd.f32 0.0, %v386
    %388 = vdwg.mxu0
    %v389 = vmul.f32 %v303, %v250
    %v390 = vmul.f32 %v305, %v251
    %v391 = vmul.f32 %v307, %v252
    %v392 = vmul.f32 %v309, %v253
    %v393 = vmul.f32 %v311, %v254
    %v394 = vmul.f32 %v313, %v255
    %v395 = vmul.f32 %v315, %v256
    %v396 = vmul.f32 %v317, %v257
    %397 = vmatprep.subr.mxu0 0.0
    %398 = vmatpush1.msra.mxu0 0.0
    %399 = vmatprep.subr.mxu0 0.0
    %400 = vmatpush1.msra.mxu0 0.0
    %401 = vmatprep.subr.mxu0 0.0
    %402 = vmatpush1.msra.mxu0 0.0
    %403 = vmatprep.subr.mxu0 0.0
    %404 = vmatpush1.msra.mxu0 0.0
    %405 = vmatprep.subr.mxu0 0.0
    %406 = vmatpush1.msra.mxu0 0.0
    %407 = vmatprep.subr.mxu0 0.0
    %408 = vmatpush1.msra.mxu0 0.0
    %409 = vmatprep.subr.mxu0 0.0
    %410 = vmatpush1.msra.mxu0 0.0
    %411 = vmatprep.subr.mxu0 0.0
    %412 = vmatpush1.msra.mxu0 0.0
    %413 = vmatprep.subr.mxu0 0.0
    %414 = vmatpush1.msra.mxu0 0.0
    %415 = vmatprep.subr.mxu0 0.0
    %416 = vmatpush1.msra.mxu0 0.0
    %417 = vmatprep.subr.mxu0 0.0
    %418 = vmatpush1.msra.mxu0 0.0
    %419 = vmatprep.subr.mxu0 0.0
    %420 = vmatpush1.msra.mxu0 0.0
    %421 = vmatprep.subr.mxu0 %v396
    %422 = vmatpush1.msra.mxu0 %v395
    %423 = vmatprep.subr.mxu0 %v394
    %424 = vmatpush1.msra.mxu0 %v393
    %425 = vmatprep.subr.mxu0 %v392
    %426 = vmatpush1.msra.mxu0 %v391
    %427 = vmatprep.subr.mxu0 %v390
    %428 = vmatpush1.msra.mxu0 %v389
    %429 = vmatprep.subr.mxu0 0.0
    %430 = vmatpush2.msra.mxu0 0.0
    %431 = vmatprep.subr.mxu0 0.0
    %432 = vmatpush2.msra.mxu0 0.0
    %433 = vmatprep.subr.mxu0 0.0
    %434 = vmatpush2.msra.mxu0 0.0
    %435 = vmatprep.subr.mxu0 0.0
    %436 = vmatpush2.msra.mxu0 0.0
    %437 = vmatprep.subr.mxu0 0.0
    %438 = vmatpush2.msra.mxu0 0.0
    %439 = vmatprep.subr.mxu0 0.0
    %440 = vmatpush2.msra.mxu0 0.0
    %441 = vmatprep.subr.mxu0 0.0
    %442 = vmatpush2.msra.mxu0 0.0
    %443 = vmatprep.subr.mxu0 0.0
    %444 = vmatpush2.msra.mxu0 0.0
    %445 = vmatprep.subr.mxu0 0.0
    %446 = vmatpush2.msra.mxu0 0.0
    %447 = vmatprep.subr.mxu0 0.0
    %448 = vmatpush2.msra.mxu0 0.0
    %449 = vmatprep.subr.mxu0 0.0
    %450 = vmatpush2.msra.mxu0 0.0
    %451 = vmatprep.subr.mxu0 0.0
    %452 = vmatpush2.msra.mxu0 0.0
    %453 = vmatprep.subr.mxu0 0.0
    %454 = vmatpush2.msra.mxu0 0.0
    %455 = vmatprep.subr.mxu0 0.0
    %456 = vmatpush2.msra.mxu0 0.0
    %457 = vmatprep.subr.mxu0 0.0
    %458 = vmatpush2.msra.mxu0 0.0
    %459 = vmatprep.subr.mxu0 0.0
    %460 = vmatpush2.msra.mxu0 0.0
    %461 = vmatprep.mubr.f32.mxu0 0.0
    %462 = vmatmul.mubr.f32.gmra.mxu0 %v70
    %v463 = vpop.f32.mrf.mxu0
    %v464 = vadd.f32 0.0, %v463
    %v465 = vpop.f32.mrf.mxu0
    %v466 = vadd.f32 0.0, %v465
    %467 = vdwg.mxu0
    %v468 = vrcp.pop %v385
    %v469 = vmul.f32 %v464, %v468
    %v470 = vrcp.pop %v387
    %v471 = vmul.f32 %v466, %v470
    %v474 = vcombine.low %v469, %v471
    %v476 = vunpack.c.l.s4 1966171168
    %v477 = vunpack.c.0.s8 %v476
    %v478 = vlaneseq
    %v479 = vshrl.u32 %v478, 7
    %v480 = vsub.s32 %v477, %v479
    %v481 = vrot.slane %v474, %v480
    %v483 = vunpack.c.l.s4 1966171168
    %v484 = vunpack.c.0.s8 %v483
    %v485 = vlaneseq
    %v486 = vshrl.u32 %v485, 7
    %v487 = vsub.s32 %v484, %v486
    %v488 = vrot.slane %v481, %v487
    %v490 = vlaneseq
    %vm491 = vcmp.ge.s32.totalorder %v490, 0
    %vm492 = vcmp.lt.s32.totalorder %v490, 256
    %vm493 = vmand %vm491, %vm492
    %494 = vst.msk [vmem:[#allocation9] sm:$0x3] %vm493, %v488
    %vm495 = vcmp.eq.f32.partialorder %v268, %v284
    %vm496 = vcmp.eq.f32.partialorder %v269, %v293
    %vm497 = vcmp.eq.f32.partialorder %v270, %v284
    %vm498 = vcmp.eq.f32.partialorder %v271, %v293
    %vm499 = vcmp.eq.f32.partialorder %v272, %v284
    %vm500 = vcmp.eq.f32.partialorder %v273, %v293
    %vm501 = vcmp.eq.f32.partialorder %v274, %v284
    %vm502 = vcmp.eq.f32.partialorder %v275, %v293
    %v503 = vsel %vm495, %v259, 32
    %v504 = vsel %vm496, %v259, 32
    %v505 = vsel %vm497, %v260, 32
    %v506 = vsel %vm498, %v260, 32
    %v507 = vsel %vm499, %v261, 32
    %v508 = vsel %vm500, %v261, 32
    %v509 = vsel %vm501, %v262, 32
    %v510 = vsel %vm502, %v262, 32
    %vm511 = vcmp.lt.s32.totalorder %v503, %v507
    %v512 = vsel %vm511, %v503, %v507
    %vm513 = vcmp.lt.s32.totalorder %v505, %v509
    %v514 = vsel %vm513, %v505, %v509
    %vm515 = vcmp.lt.s32.totalorder %v512, %v514
    %v516 = vsel %vm515, %v512, %v514
    %v517 = vrot.slane %v516, 4
    %vm518 = vcmp.lt.s32.totalorder %v516, %v517
    %v519 = vsel %vm518, %v516, %v517
    %v520 = vrot.slane %v519, 2
    %vm521 = vcmp.lt.s32.totalorder %v519, %v520
    %v522 = vsel %vm521, %v519, %v520
    %v523 = vrot.slane %v522, 1
    %vm524 = vcmp.lt.s32.totalorder %v522, %v523
    %v525 = vsel %vm524, %v522, %v523
    %vm526 = vcmp.lt.s32.totalorder %v504, %v508
    %v527 = vsel %vm526, %v504, %v508
    %vm528 = vcmp.lt.s32.totalorder %v506, %v510
    %v529 = vsel %vm528, %v506, %v510
    %vm530 = vcmp.lt.s32.totalorder %v527, %v529
    %v531 = vsel %vm530, %v527, %v529
    %v532 = vrot.slane %v531, 4
    %vm533 = vcmp.lt.s32.totalorder %v531, %v532
    %v534 = vsel %vm533, %v531, %v532
    %v535 = vrot.slane %v534, 2
    %vm536 = vcmp.lt.s32.totalorder %v534, %v535
    %v537 = vsel %vm536, %v534, %v535
    %v538 = vrot.slane %v537, 1
    %vm539 = vcmp.lt.s32.totalorder %v537, %v538
    %v540 = vsel %vm539, %v537, %v538
    %v541 = vcvt.s32.f32 %v525
    %v542 = vcvt.s32.f32 %v540
    %v545 = vcombine.low %v541, %v542
    %v547 = vunpack.c.l.s4 1966171168
    %v548 = vunpack.c.0.s8 %v547
    %v549 = vlaneseq
    %v550 = vshrl.u32 %v549, 7
    %v551 = vsub.s32 %v548, %v550
    %v552 = vrot.slane %v545, %v551
    %v554 = vunpack.c.l.s4 1966171168
    %v555 = vunpack.c.0.s8 %v554
    %v556 = vlaneseq
    %v557 = vshrl.u32 %v556, 7
    %v558 = vsub.s32 %v555, %v557
    %v559 = vrot.slane %v552, %v558
    %561 = vst.msk [vmem:[#allocation10] sm:$0x3] %vm493, %v559
    %v562 = vpack.c.bf16 %v252, %v250
    %v563 = vpack.c.bf16 %v253, %v251
    %v564 = vpack.c.bf16 %v256, %v254
    %v565 = vpack.c.bf16 %v257, %v255
    %v570 = vunpack.c.l.b16 %v562
    %v571 = vunpack.c.l.b16 %v563
    %v572 = vunpack.c.h.b16 %v562
    %v573 = vunpack.c.h.b16 %v563
    %v574 = vunpack.c.l.b16 %v564
    %v575 = vunpack.c.l.b16 %v565
    %v576 = vunpack.c.h.b16 %v564
    %v577 = vunpack.c.h.b16 %v565
    %v578 = vpack.c.b16 %v571, %v570
    %v579 = vpack.c.b16 %v573, %v572
    %v580 = vpack.c.b16 %v575, %v574
    %v581 = vpack.c.b16 %v577, %v576
    %586 = vst [vmem:[#allocation12] sm:$0xff] %v578
    %587 = vst [vmem:[#allocation12 + $0x8] sm:$0xff] %v579
    %588 = vst [vmem:[#allocation12 + $0x10] sm:$0xff] %v580
    %589 = vst [vmem:[#allocation12 + $0x18] sm:$0xff] %v581
    // Predicated region
    $region18: #{tpu_custom_call.1} parent=1 // pred_check
      _
    $region19: #{tpu_custom_call.1} parent=1 // pred_check_branch
      %591 = sbr.rel (0) target = $region21
    $region20: #{tpu_custom_call.1} parent=1 // pred_region
      %s593 = ssub.s32 32, 32
      %594 = vsyncadd [#allocation6], %s593
      %s596 = sshll.u32 [#allocation9], 4
      %s597 = int_to_ptr.vmem [resolvable:$true] %s596
      %599 = dma.vmem_to_hbm [thread:$0]  %s597, 32, %s3, [#allocation6]
    $region21: #{tpu_custom_call.1} parent=1 // pred_fallthru
      _
    // Predicated region
    $region22: #{tpu_custom_call.1} parent=1 // pred_check
      _
    $region23: #{tpu_custom_call.1} parent=1 // pred_check_branch
      %601 = sbr.rel (0) target = $region25
    $region24: #{tpu_custom_call.1} parent=1 // pred_region
      %s603 = ssub.s32 32, 32
      %604 = vsyncadd [#allocation11], %s603
      %s606 = sshll.u32 [#allocation10], 4
      %s607 = int_to_ptr.vmem [resolvable:$true] %s606
      %609 = dma.vmem_to_hbm [thread:$0]  %s607, 32, %s4, [#allocation11]
    $region25: #{tpu_custom_call.1} parent=1 // pred_fallthru
      _
    // Predicated region
    $region26: #{tpu_custom_call.1} parent=1 // pred_check
      _
    $region27: #{tpu_custom_call.1} parent=1 // pred_check_branch
      %611 = sbr.rel (0) target = $region29
    $region28: #{tpu_custom_call.1} parent=1 // pred_region
      %s613 = ssub.s32 512, 512
      %614 = vsyncadd [#allocation11], %s613
      %s615 = sshll.u32 [#allocation12], 4
      %s616 = int_to_ptr.vmem [resolvable:$true] %s615
      %621 = dma.vmem_to_hbm [thread:$0]  %s616, 512, %s5, [#allocation11], 128, 128, 8
    $region29: #{tpu_custom_call.1} parent=1 // pred_fallthru
      _
    // Predicated region
    $region30: #{tpu_custom_call.1} parent=1 // pred_check
      _
    $region31: #{tpu_custom_call.1} parent=1 // pred_check_branch
      %623 = sbr.rel (0) target = $region33
    $region32: #{tpu_custom_call.1} parent=1 // pred_region
      %624 = dma.done [#allocation6], 32
    $region33: #{tpu_custom_call.1} parent=1 // pred_fallthru
      _
    // Predicated region
    $region34: #{tpu_custom_call.1} parent=1 // pred_check
      _
    $region35: #{tpu_custom_call.1} parent=1 // pred_check_branch
      %626 = sbr.rel (0) target = $region37
    $region36: #{tpu_custom_call.1} parent=1 // pred_region
      %627 = dma.done [#allocation11], 32
    $region37: #{tpu_custom_call.1} parent=1 // pred_fallthru
      _
    // Predicated region
    $region38: #{tpu_custom_call.1} parent=1 // pred_check
      _
    $region39: #{tpu_custom_call.1} parent=1 // pred_check_branch
      %629 = sbr.rel (0) target = $region41
    $region40: #{tpu_custom_call.1} parent=1 // pred_region
      %630 = dma.done [#allocation11], 512
    $region41: #{tpu_custom_call.1} parent=1 // pred_fallthru
      _
    %631 = vsyncpa [#allocation5], 1
    %632 = vsyncpa [#allocation8], 1
    %633 = vsyncpa [#allocation6], 1
    %634 = vsyncpa [#allocation11], 1

</llo_original>
